<compile_context>
chip_gen: v7x
topology: tpu7x:2x2x1
jax: 0.10.0
libtpu: 0.0.40
codegen_flags: <defaults>
</compile_context>

<pallas_src>
import math

import jax
import jax.numpy as jnp
from jax import lax
from jax.experimental import pallas as pl
from jax.experimental.pallas import tpu as pltpu


def _round_up(x: int, m: int) -> int:
    return ((x + m - 1) // m) * m


def _device_kind() -> str:
    try:
        return jax.devices()[0].device_kind.lower()
    except Exception:
        return ""


def _is_pre_v6() -> bool:
    # v5e and older: 128x128 MXU lanes, no bf16 VPU/EUP path.
    kind = _device_kind()
    return any(tag in kind for tag in ("v2", "v3", "v4", "v5"))


def _make_attention_kernel(mask_keys: bool, bf16_softmax: bool):
    def kernel(q_ref, k_ref, kbias_ref, wq_ref, bq_ref, wk_ref, bk_ref,
               wv_ref, bv_ref, out_ref, score_ref, k_sc, v_sc):
        qi = pl.program_id(1)

        # --- K / V projections: once per batch (qi == 0), reused by every
        # query tile of this batch via persistent bf16 VMEM scratch.
        # TODO(synk): for B == 1 on v7x, hoist this projection into a separate
        # call so the q-tile axis can be marked "parallel" (megacore).
        @pl.when(qi == 0)
        def _():
            k = k_ref[0]                                          # (Sk_p, Dk) bf16
            new_k = jnp.dot(k, wk_ref[...],
                            preferred_element_type=jnp.float32) + bk_ref[...]
            new_v = jnp.dot(k, wv_ref[...],
                            preferred_element_type=jnp.float32) + bv_ref[...]
            k_sc[...] = new_k.astype(jnp.bfloat16)
            v_sc[...] = new_v.astype(jnp.bfloat16)

        # --- Q projection for this tile.  1/sqrt(H) is pre-folded into wq/bq
        # by the wrapper, so no per-tile (tq, Sk_p) rescale is needed.
        q = q_ref[0]                                              # (tq, Dq) bf16
        new_q = jnp.dot(q, wq_ref[...],
                        preferred_element_type=jnp.float32) + bq_ref[...]

        # --- scores = Q @ K^T: contract the last dims of both operands
        # directly so no transposed copy of K is materialized.
        s = lax.dot_general(new_q.astype(jnp.bfloat16), k_sc[...],
                            dimension_numbers=(((1,), (1,)), ((), ())),
                            preferred_element_type=jnp.float32)

        if mask_keys:
            # Additive bias: 0 on valid keys, -1e30 on zero-padded key columns
            # (single broadcast add instead of iota + compare + select).
            s = s + kbias_ref[...]

        # --- numerically stable softmax.  exp in bf16 where the EUP supports
        # it (v6e/v7x); row-sum and the approx reciprocal stay in f32.
        m = jnp.max(s, axis=-1, keepdims=True)
        if bf16_softmax:
            e = jnp.exp((s - m).astype(jnp.bfloat16)).astype(jnp.float32)
        else:
            e = jnp.exp(s - m)
        denom = jnp.sum(e, axis=-1, keepdims=True)
        p = e * pl.reciprocal(denom, approx=True)
        # NOTE: the reference's NaN->0 pass is dead code on the mask=None path
        # (denominator >= 1 after max subtraction), so it is omitted.
        # TODO(synk): optional `mask` argument (-inf where mask == 0) not wired in.

        score_ref[0] = p
        out_ref[0] = jnp.dot(p.astype(jnp.bfloat16), v_sc[...],
                             preferred_element_type=jnp.float32)

    return kernel


def attention_forward(key, query, params, hidden_dim):
    """Pallas implementation of attention.forward (mask=None path).

    key:   (B, Sk, kembed_dim)
    query: (B, Sq, qembed_dim)
    Returns (output (B, Sq, hidden_dim), score (B, Sq, Sk)).
    """
    wq, bq = params["for_query"]
    wk, bk = params["for_key"]
    wv, bv = params["for_value"]

    B, Sq, Dq = query.shape
    _, Sk, Dk = key.shape
    H = hidden_dim
    f32 = jnp.float32
    bf16 = jnp.bfloat16

    pre_v6 = _is_pre_v6()

    # --- lane-dense / MXU-friendly padded sizes ------------------------------
    Hp = _round_up(H, 128)                 # lane dim of output / K/V projection
    Sk_p = _round_up(Sk, 128)              # lane dim of the score output
    if Sq >= 256 and not pre_v6:
        tq = 256                           # fill the 256x256 MXU on v6e / v7x
    elif Sq >= 128:
        tq = 128
    else:
        tq = _round_up(Sq, 8)
    Sq_p = _round_up(Sq, tq)
    n_q_tiles = Sq_p // tq

    # bf16 inputs: the kernel feeds the MXU in bf16 anyway, so cast in the
    # wrapper and halve the Q/K input DMA and their double-buffered VMEM.
    query_p = jnp.pad(query.astype(f32),
                      ((0, 0), (0, Sq_p - Sq), (0, 0))).astype(bf16)
    key_p = jnp.pad(key.astype(f32),
                    ((0, 0), (0, Sk_p - Sk), (0, 0))).astype(bf16)

    inv_norm = 1.0 / float(H ** 0.5)

    def pad_w(w, scale=1.0):   # (in, H) -> (in, Hp) bf16
        w = w.astype(f32) * scale
        return jnp.pad(w, ((0, 0), (0, Hp - H))).astype(bf16)

    def pad_b(b, scale=1.0):   # (H,) -> (1, Hp) f32 (added on the f32 accum)
        b = b.astype(f32) * scale
        return jnp.pad(b, (0, Hp - H)).reshape(1, Hp)

    # 1/sqrt(H) folded into the Q projection (one-time weight/bias scale).
    wq_p, bq_p = pad_w(wq, inv_norm), pad_b(bq, inv_norm)
    wk_p, bk_p = pad_w(wk), pad_b(bk)
    wv_p, bv_p = pad_w(wv), pad_b(bv)

    # Additive key-padding bias (0 on real keys, -1e30 on padded columns).
    kbias = jnp.where(jnp.arange(Sk_p) < Sk, 0.0, -1e30).astype(f32).reshape(1, Sk_p)

    mask_keys = Sk_p != Sk
    bf16_softmax = not pre_v6
    kernel = _make_attention_kernel(mask_keys, bf16_softmax)

    out_shape = (
        jax.ShapeDtypeStruct((B, Sq_p, Hp), f32),
        jax.ShapeDtypeStruct((B, Sq_p, Sk_p), f32),
    )

    # TODO(synk): single-buffer the constant operands (key / weights / biases)
    # via pipeline_mode=pl.Buffered(1) or a manual pl.ANY + DMA path once that
    # is validated on the target jax version; they are re-used with a constant
    # block index so no re-DMA happens, only the extra buffer is held.
    grid_spec = pltpu.PrefetchScalarGridSpec(
        num_scalar_prefetch=0,
        grid=(B, n_q_tiles),
        in_specs=[
            pl.BlockSpec((1, tq, Dq), lambda b, qi: (b, qi, 0)),     # query tile
            pl.BlockSpec((1, Sk_p, Dk), lambda b, qi: (b, 0, 0)),    # key (per batch)
            pl.BlockSpec((1, Sk_p), lambda b, qi: (0, 0)),           # key-pad bias
            pl.BlockSpec((Dq, Hp), lambda b, qi: (0, 0)),            # Wq (pre-scaled)
            pl.BlockSpec((1, Hp), lambda b, qi: (0, 0)),             # bq (pre-scaled)
            pl.BlockSpec((Dk, Hp), lambda b, qi: (0, 0)),            # Wk
            pl.BlockSpec((1, Hp), lambda b, qi: (0, 0)),             # bk
            pl.BlockSpec((Dk, Hp), lambda b, qi: (0, 0)),            # Wv
            pl.BlockSpec((1, Hp), lambda b, qi: (0, 0)),             # bv
        ],
        out_specs=[
            pl.BlockSpec((1, tq, Hp), lambda b, qi: (b, qi, 0)),     # output
            pl.BlockSpec((1, tq, Sk_p), lambda b, qi: (b, qi, 0)),   # score
        ],
        scratch_shapes=[
            pltpu.VMEM((Sk_p, Hp), bf16),   # projected K (per batch)
            pltpu.VMEM((Sk_p, Hp), bf16),   # projected V (per batch)
        ],
    )

    # Explicit VMEM budget: double-buffered blocks + persistent scratch + slack.
    est = (2 * tq * Dq * 2                 # query blocks (bf16)
           + 2 * Sk_p * Dk * 2             # key blocks (bf16)
           + 2 * Sk_p * 4                  # key-pad bias
           + 2 * (Dq + 2 * Dk) * Hp * 2    # weight blocks (bf16)
           + 2 * 3 * Hp * 4                # bias blocks (f32)
           + 2 * tq * Hp * 4               # output blocks (f32)
           + 2 * tq * Sk_p * 4             # score blocks (f32)
           + 2 * Sk_p * Hp * 2)            # persistent K / V scratch (bf16)
    vmem_limit = max(32 << 20, min(64 << 20, 2 * est))

    fn = pl.pallas_call(
        kernel,
        out_shape=out_shape,
        grid_spec=grid_spec,
        compiler_params=pltpu.CompilerParams(
            # batch axis shards across TensorCores; q-tile axis is sequential
            # so the per-batch K/V scratch stays valid across tiles.
            dimension_semantics=("parallel", "arbitrary"),
            vmem_limit_bytes=int(vmem_limit)),
    )
    out_p, score_p = fn(query_p, key_p, kbias,
                        wq_p, bq_p, wk_p, bk_p, wv_p, bv_p)
    return out_p[:, :Sq, :H], score_p[:, :Sq, :Sk]


def init_params(rng, qembed_dim, kembed_dim, vembed_dim, hidden_dim):
    """Deterministic nn.Linear-style init (uniform in ±1/sqrt(fan_in))."""
    def linear(key_, in_dim, out_dim):
        k1, k2 = jax.random.split(key_)
        bound = 1.0 / math.sqrt(in_dim)
        # stored as (in_dim, out_dim) so x @ W matches PyTorch x @ W^T
        w = jax.random.uniform(k1, (in_dim, out_dim), jnp.float32, -bound, bound)
        b = jax.random.uniform(k2, (out_dim,), jnp.float32, -bound, bound)
        return w, b

    kq, kk, kv = jax.random.split(rng, 3)
    return {
        "for_query": linear(kq, qembed_dim, hidden_dim),
        "for_key": linear(kk, kembed_dim, hidden_dim),
        "for_value": linear(kv, vembed_dim, hidden_dim),
    }


def reference_forward(key, query, params, hidden_dim):
    """Pure-JAX f32 reference for correctness check."""
    wq, bq = params["for_query"]
    wk, bk = params["for_key"]
    wv, bv = params["for_value"]
    new_q = query @ wq + bq
    new_k = key @ wk + bk
    new_v = key @ wv + bv
    score = jnp.einsum("bqh,bkh->bqk", new_q, new_k) / (hidden_dim ** 0.5)
    score = jax.nn.softmax(score, axis=-1)
    score = jnp.where(jnp.isnan(score), 0.0, score)
    out = jnp.einsum("bqk,bkh->bqh", score, new_v)
    return out, score


if __name__ == "__main__":
    # Small shapes consistent with the module: batch=2, seq_q=seq_k=8,
    # qembed=kembed=vembed=32, hidden=32.
    B, Sq, Sk = 2, 8, 8
    qembed_dim, kembed_dim, hidden_dim = 32, 32, 32

    root = jax.random.PRNGKey(0)
    k_params, k_q, k_k = jax.random.split(root, 3)

    params = init_params(k_params, qembed_dim, kembed_dim, kembed_dim, hidden_dim)
    query = jax.random.normal(k_q, (B, Sq, qembed_dim), jnp.float32)
    key = jax.random.normal(k_k, (B, Sk, kembed_dim), jnp.float32)

    out, score = attention_forward(key, query, params, hidden_dim)
    out = jax.block_until_ready(out)
    score = jax.block_until_ready(score)

    ref_out, ref_score = reference_forward(key, query, params, hidden_dim)
    assert out.shape == (B, Sq, hidden_dim)
    assert score.shape == (B, Sq, Sk)
    # bf16 matmul operands / bf16 exp + approx EUP reciprocal => moderate tolerances.
    assert jnp.allclose(score, ref_score, atol=2e-2, rtol=2e-2), \
        float(jnp.max(jnp.abs(score - ref_score)))
    assert jnp.allclose(out, ref_out, atol=5e-2, rtol=5e-2), \
        float(jnp.max(jnp.abs(out - ref_out)))
    # softmax rows sum to ~1 (padded key columns masked out; approx reciprocal)
    assert jnp.allclose(score.sum(-1), 1.0, atol=1e-2)

    print("KERNEL_OK")
</pallas_src>

<mosaic_0001>
module attributes {stable_mosaic.version = 11 : i64} {
  func.func @kernel(%arg0: i32, %arg1: i32, %arg2: memref<1x8x32xbf16, #tpu.memory_space<vmem>>, %arg3: memref<1x128x32xbf16, #tpu.memory_space<vmem>>, %arg4: memref<1x128xf32, #tpu.memory_space<vmem>>, %arg5: memref<32x128xbf16, #tpu.memory_space<vmem>>, %arg6: memref<1x128xf32, #tpu.memory_space<vmem>>, %arg7: memref<32x128xbf16, #tpu.memory_space<vmem>>, %arg8: memref<1x128xf32, #tpu.memory_space<vmem>>, %arg9: memref<32x128xbf16, #tpu.memory_space<vmem>>, %arg10: memref<1x128xf32, #tpu.memory_space<vmem>>, %arg11: memref<1x8x128xf32, #tpu.memory_space<vmem>>, %arg12: memref<1x8x128xf32, #tpu.memory_space<vmem>>, %arg13: memref<128x128xbf16, #tpu.memory_space<vmem>>, %arg14: memref<128x128xbf16, #tpu.memory_space<vmem>>) attributes {dimension_semantics = [#tpu.dimension_semantics<parallel>, #tpu.dimension_semantics<arbitrary>], iteration_bounds = array<i64: 2, 1>, scalar_prefetch = 0 : i64, scratch_operands = 2 : i64, tpu.core_type = #tpu.core_type<tc>, window_params = [{transform_indices = @transform_0, window_bounds = array<i64: 1, 8, 32>}, {transform_indices = @transform_1, window_bounds = array<i64: 1, 128, 32>}, {pipeline_mode = #tpu.pipeline_mode<synchronous>, transform_indices = @transform_2, window_bounds = array<i64: 1, 128>}, {pipeline_mode = #tpu.pipeline_mode<synchronous>, transform_indices = @transform_3, window_bounds = array<i64: 32, 128>}, {pipeline_mode = #tpu.pipeline_mode<synchronous>, transform_indices = @transform_4, window_bounds = array<i64: 1, 128>}, {pipeline_mode = #tpu.pipeline_mode<synchronous>, transform_indices = @transform_5, window_bounds = array<i64: 32, 128>}, {pipeline_mode = #tpu.pipeline_mode<synchronous>, transform_indices = @transform_6, window_bounds = array<i64: 1, 128>}, {pipeline_mode = #tpu.pipeline_mode<synchronous>, transform_indices = @transform_7, window_bounds = array<i64: 32, 128>}, {pipeline_mode = #tpu.pipeline_mode<synchronous>, transform_indices = @transform_8, window_bounds = array<i64: 1, 128>}, {transform_indices = @transform_9, window_bounds = array<i64: 1, 8, 128>}, {transform_indices = @transform_10, window_bounds = array<i64: 1, 8, 128>}]} {
    %c0_i32 = arith.constant 0 : i32
    %0 = arith.cmpi eq, %arg1, %c0_i32 : i32
    %1 = arith.extui %0 : i1 to i32
    %c0_i32_0 = arith.constant 0 : i32
    %2 = arith.cmpi ne, %1, %c0_i32_0 : i32
    scf.if %2 {
      %c0_23 = arith.constant 0 : index
      %c0_24 = arith.constant 0 : index
      %c0_25 = arith.constant 0 : index
      %37 = vector.load %arg3[%c0_23, %c0_24, %c0_25] : memref<1x128x32xbf16, #tpu.memory_space<vmem>>, vector<1x128x32xbf16>
      %38 = vector.shape_cast %37 : vector<1x128x32xbf16> to vector<128x32xbf16>
      %c0_26 = arith.constant 0 : index
      %c0_27 = arith.constant 0 : index
      %39 = vector.load %arg7[%c0_26, %c0_27] : memref<32x128xbf16, #tpu.memory_space<vmem>>, vector<32x128xbf16>
      %cst_28 = arith.constant dense<0.000000e+00> : vector<128x128xf32>
      %40 = tpu.matmul %38, %39, %cst_28 {dimension_numbers = #tpu.dot_dimension_numbers<[1], [0], [0], [1], [0, 0, 1, 1], [], []>} : vector<128x32xbf16>, vector<32x128xbf16>, vector<128x128xf32> -> vector<128x128xf32>
      %c0_29 = arith.constant 0 : index
      %c0_30 = arith.constant 0 : index
      %41 = vector.load %arg8[%c0_29, %c0_30] : memref<1x128xf32, #tpu.memory_space<vmem>>, vector<1x128xf32>
      %42 = vector.broadcast %41 : vector<1x128xf32> to vector<128x128xf32>
      %43 = arith.addf %40, %42 : vector<128x128xf32>
      %c0_31 = arith.constant 0 : index
      %c0_32 = arith.constant 0 : index
      %44 = vector.load %arg9[%c0_31, %c0_32] : memref<32x128xbf16, #tpu.memory_space<vmem>>, vector<32x128xbf16>
      %cst_33 = arith.constant dense<0.000000e+00> : vector<128x128xf32>
      %45 = tpu.matmul %38, %44, %cst_33 {dimension_numbers = #tpu.dot_dimension_numbers<[1], [0], [0], [1], [0, 0, 1, 1], [], []>} : vector<128x32xbf16>, vector<32x128xbf16>, vector<128x128xf32> -> vector<128x128xf32>
      %c0_34 = arith.constant 0 : index
      %c0_35 = arith.constant 0 : index
      %46 = vector.load %arg10[%c0_34, %c0_35] : memref<1x128xf32, #tpu.memory_space<vmem>>, vector<1x128xf32>
      %47 = vector.broadcast %46 : vector<1x128xf32> to vector<128x128xf32>
      %48 = arith.addf %45, %47 : vector<128x128xf32>
      %49 = arith.truncf %43 : vector<128x128xf32> to vector<128x128xbf16>
      %c0_36 = arith.constant 0 : index
      %c0_37 = arith.constant 0 : index
      %50 = vector.load %arg13[%c0_36, %c0_37] : memref<128x128xbf16, #tpu.memory_space<vmem>>, vector<128x128xbf16>
      tpu.vector_store %arg13[%c0_36, %c0_37], %49 {strides = array<i32>} : memref<128x128xbf16, #tpu.memory_space<vmem>>, vector<128x128xbf16>,
      %51 = arith.truncf %48 : vector<128x128xf32> to vector<128x128xbf16>
      %c0_38 = arith.constant 0 : index
      %c0_39 = arith.constant 0 : index
      %52 = vector.load %arg14[%c0_38, %c0_39] : memref<128x128xbf16, #tpu.memory_space<vmem>>, vector<128x128xbf16>
      tpu.vector_store %arg14[%c0_38, %c0_39], %51 {strides = array<i32>} : memref<128x128xbf16, #tpu.memory_space<vmem>>, vector<128x128xbf16>,
    } else {
    }
    %c0 = arith.constant 0 : index
    %c0_1 = arith.constant 0 : index
    %c0_2 = arith.constant 0 : index
    %3 = vector.load %arg2[%c0, %c0_1, %c0_2] : memref<1x8x32xbf16, #tpu.memory_space<vmem>>, vector<1x8x32xbf16>
    %4 = vector.shape_cast %3 : vector<1x8x32xbf16> to vector<8x32xbf16>
    %c0_3 = arith.constant 0 : index
    %c0_4 = arith.constant 0 : index
    %5 = vector.load %arg5[%c0_3, %c0_4] : memref<32x128xbf16, #tpu.memory_space<vmem>>, vector<32x128xbf16>
    %cst = arith.constant dense<0.000000e+00> : vector<8x128xf32>
    %6 = tpu.matmul %4, %5, %cst {dimension_numbers = #tpu.dot_dimension_numbers<[1], [0], [0], [1], [0, 0, 1, 1], [], []>} : vector<8x32xbf16>, vector<32x128xbf16>, vector<8x128xf32> -> vector<8x128xf32>
    %c0_5 = arith.constant 0 : index
    %c0_6 = arith.constant 0 : index
    %7 = vector.load %arg6[%c0_5, %c0_6] : memref<1x128xf32, #tpu.memory_space<vmem>>, vector<1x128xf32>
    %8 = vector.broadcast %7 : vector<1x128xf32> to vector<8x128xf32>
    %9 = arith.addf %6, %8 : vector<8x128xf32>
    %10 = arith.truncf %9 : vector<8x128xf32> to vector<8x128xbf16>
    %c0_7 = arith.constant 0 : index
    %c0_8 = arith.constant 0 : index
    %11 = vector.load %arg13[%c0_7, %c0_8] : memref<128x128xbf16, #tpu.memory_space<vmem>>, vector<128x128xbf16>
    %cst_9 = arith.constant dense<0.000000e+00> : vector<8x128xf32>
    %12 = tpu.matmul %10, %11, %cst_9 {dimension_numbers = #tpu.dot_dimension_numbers<[1], [1], [0], [0], [0, 0, 1, 0], [], []>} : vector<8x128xbf16>, vector<128x128xbf16>, vector<8x128xf32> -> vector<8x128xf32>
    %c0_10 = arith.constant 0 : index
    %c0_11 = arith.constant 0 : index
    %13 = vector.load %arg4[%c0_10, %c0_11] : memref<1x128xf32, #tpu.memory_space<vmem>>, vector<1x128xf32>
    %14 = vector.broadcast %13 : vector<1x128xf32> to vector<8x128xf32>
    %15 = arith.addf %12, %14 : vector<8x128xf32>
    %cst_12 = arith.constant dense<0xFF800000> : vector<8xf32>
    %16 = vector.multi_reduction <maximumf>, %15, %cst_12 [1] : vector<8x128xf32> to vector<8xf32>
    %17 = vector.shape_cast %16 : vector<8xf32> to vector<8x1xf32>
    %18 = vector.broadcast %17 : vector<8x1xf32> to vector<8x128xf32>
    %19 = arith.subf %15, %18 : vector<8x128xf32>
    %20 = arith.truncf %19 : vector<8x128xf32> to vector<8x128xbf16>
    %21 = math.exp %20 : vector<8x128xbf16>
    %22 = arith.extf %21 : vector<8x128xbf16> to vector<8x128xf32>
    %cst_13 = arith.constant dense<0.000000e+00> : vector<8xf32>
    %23 = vector.multi_reduction <add>, %22, %cst_13 [1] : vector<8x128xf32> to vector<8xf32>
    %24 = vector.shape_cast %23 : vector<8xf32> to vector<8x1xf32>
    %25 = tpu.reciprocal %24 {approx = true} : vector<8x1xf32> -> vector<8x1xf32>
    %26 = vector.broadcast %25 : vector<8x1xf32> to vector<8x128xf32>
    %27 = arith.mulf %22, %26 : vector<8x128xf32>
    %c0_14 = arith.constant 0 : index
    %c0_15 = arith.constant 0 : index
    %c0_16 = arith.constant 0 : index
    %28 = vector.load %arg12[%c0_14, %c0_15, %c0_16] : memref<1x8x128xf32, #tpu.memory_space<vmem>>, vector<1x8x128xf32>
    %29 = vector.shape_cast %28 : vector<1x8x128xf32> to vector<8x128xf32>
    %30 = vector.shape_cast %27 : vector<8x128xf32> to vector<1x8x128xf32>
    tpu.vector_store %arg12[%c0_14, %c0_15, %c0_16], %30 {strides = array<i32>} : memref<1x8x128xf32, #tpu.memory_space<vmem>>, vector<1x8x128xf32>,
    %31 = arith.truncf %27 : vector<8x128xf32> to vector<8x128xbf16>
    %c0_17 = arith.constant 0 : index
    %c0_18 = arith.constant 0 : index
    %32 = vector.load %arg14[%c0_17, %c0_18] : memref<128x128xbf16, #tpu.memory_space<vmem>>, vector<128x128xbf16>
    %cst_19 = arith.constant dense<0.000000e+00> : vector<8x128xf32>
    %33 = tpu.matmul %31, %32, %cst_19 {dimension_numbers = #tpu.dot_dimension_numbers<[1], [0], [0], [1], [0, 0, 1, 1], [], []>} : vector<8x128xbf16>, vector<128x128xbf16>, vector<8x128xf32> -> vector<8x128xf32>
    %c0_20 = arith.constant 0 : index
    %c0_21 = arith.constant 0 : index
    %c0_22 = arith.constant 0 : index
    %34 = vector.load %arg11[%c0_20, %c0_21, %c0_22] : memref<1x8x128xf32, #tpu.memory_space<vmem>>, vector<1x8x128xf32>
    %35 = vector.shape_cast %34 : vector<1x8x128xf32> to vector<8x128xf32>
    %36 = vector.shape_cast %33 : vector<8x128xf32> to vector<1x8x128xf32>
    tpu.vector_store %arg11[%c0_20, %c0_21, %c0_22], %36 {strides = array<i32>} : memref<1x8x128xf32, #tpu.memory_space<vmem>>, vector<1x8x128xf32>,
    return
  }
  func.func @transform_0(%arg0: i32, %arg1: i32) -> (i32, i32, i32) {
    %c0_i32 = arith.constant 0 : i32
    %c0_i32_0 = arith.constant 0 : i32
    return %arg0, %arg1, %c0_i32 : i32, i32, i32
  }
  func.func @transform_1(%arg0: i32, %arg1: i32) -> (i32, i32, i32) {
    %c0_i32 = arith.constant 0 : i32
    %c0_i32_0 = arith.constant 0 : i32
    %c0_i32_1 = arith.constant 0 : i32
    return %arg0, %c0_i32, %c0_i32_0 : i32, i32, i32
  }
  func.func @transform_2(%arg0: i32, %arg1: i32) -> (i32, i32) {
    %c0_i32 = arith.constant 0 : i32
    %c0_i32_0 = arith.constant 0 : i32
    %c0_i32_1 = arith.constant 0 : i32
    return %c0_i32, %c0_i32_0 : i32, i32
  }
  func.func @transform_3(%arg0: i32, %arg1: i32) -> (i32, i32) {
    %c0_i32 = arith.constant 0 : i32
    %c0_i32_0 = arith.constant 0 : i32
    %c0_i32_1 = arith.constant 0 : i32
    return %c0_i32, %c0_i32_0 : i32, i32
  }
  func.func @transform_4(%arg0: i32, %arg1: i32) -> (i32, i32) {
    %c0_i32 = arith.constant 0 : i32
    %c0_i32_0 = arith.constant 0 : i32
    %c0_i32_1 = arith.constant 0 : i32
    return %c0_i32, %c0_i32_0 : i32, i32
  }
  func.func @transform_5(%arg0: i32, %arg1: i32) -> (i32, i32) {
    %c0_i32 = arith.constant 0 : i32
    %c0_i32_0 = arith.constant 0 : i32
    %c0_i32_1 = arith.constant 0 : i32
    return %c0_i32, %c0_i32_0 : i32, i32
  }
  func.func @transform_6(%arg0: i32, %arg1: i32) -> (i32, i32) {
    %c0_i32 = arith.constant 0 : i32
    %c0_i32_0 = arith.constant 0 : i32
    %c0_i32_1 = arith.constant 0 : i32
    return %c0_i32, %c0_i32_0 : i32, i32
  }
  func.func @transform_7(%arg0: i32, %arg1: i32) -> (i32, i32) {
    %c0_i32 = arith.constant 0 : i32
    %c0_i32_0 = arith.constant 0 : i32
    %c0_i32_1 = arith.constant 0 : i32
    return %c0_i32, %c0_i32_0 : i32, i32
  }
  func.func @transform_8(%arg0: i32, %arg1: i32) -> (i32, i32) {
    %c0_i32 = arith.constant 0 : i32
    %c0_i32_0 = arith.constant 0 : i32
    %c0_i32_1 = arith.constant 0 : i32
    return %c0_i32, %c0_i32_0 : i32, i32
  }
  func.func @transform_9(%arg0: i32, %arg1: i32) -> (i32, i32, i32) {
    %c0_i32 = arith.constant 0 : i32
    %c0_i32_0 = arith.constant 0 : i32
    return %arg0, %arg1, %c0_i32 : i32, i32, i32
  }
  func.func @transform_10(%arg0: i32, %arg1: i32) -> (i32, i32, i32) {
    %c0_i32 = arith.constant 0 : i32
    %c0_i32_0 = arith.constant 0 : i32
    return %arg0, %arg1, %c0_i32 : i32, i32, i32
  }
}

</mosaic_0001>

<llo_original>
// kernel: tpu_custom_call.1
$region0: #{tpu_custom_call.1}
  #allocation0 [shape = 'u32[]', space=smem, size = 0x4, offset = 0x4, fixed_abs, tag = 'smem constant byte address 0x4 - core index']
  #allocation1 [shape = 'u32[144,128]{1,0:T(1,128)}', space=vmem, size = 0x12000, scoped, tag = 'internal scratch']
  #allocation2 [shape = 'bf16[128,128]{1,0:T(16,128)(2,1)}', space=vmem, size = 0x8000, scoped, tag = 'scratch operand']
  #allocation3 [shape = 'bf16[128,128]{1,0:T(16,128)(2,1)}', space=vmem, size = 0x8000, scoped, tag = 'scratch operand']
  %s0 = inlined_call_operand.vmem [shape: bf16[2,8,32], index: 0, kind: input, shape index: {}]
  %s1 = inlined_call_operand.vmem [shape: bf16[2,128,32], index: 1, kind: input, shape index: {}]
  %s2 = inlined_call_operand.vmem [shape: f32[1,128], index: 2, kind: input, shape index: {}]
  %s3 = inlined_call_operand.vmem [shape: bf16[32,128], index: 3, kind: input, shape index: {}]
  %s4 = inlined_call_operand.vmem [shape: f32[1,128], index: 4, kind: input, shape index: {}]
  %s5 = inlined_call_operand.vmem [shape: bf16[32,128], index: 5, kind: input, shape index: {}]
  %s6 = inlined_call_operand.vmem [shape: f32[1,128], index: 6, kind: input, shape index: {}]
  %s7 = inlined_call_operand.vmem [shape: bf16[32,128], index: 7, kind: input, shape index: {}]
  %s8 = inlined_call_operand.vmem [shape: f32[1,128], index: 8, kind: input, shape index: {}]
  %s9 = inlined_call_operand.hbm [shape: f32[2,8,128], index: 9, kind: output, shape index: {0}]
  %s10 = inlined_call_operand.hbm [shape: f32[2,8,128], index: 10, kind: output, shape index: {1}]
  %11 = xla_tuple %s9, %s10
  %s12 = sld [smem:[#allocation0]]
  $region81: #{tpu_custom_call.1} parent=0
    _
  %s14 = ssub.s32 1, %s12
  %s15 = scalar_select 0, %s14, %s12
  $region1: #{tpu_custom_call.1} parent=0
    #allocation4 [shape = 'u8[8192]{0}', space=vmem, size = 0x2000, scoped, tag = 'output window, operand 0']
    #allocation5 [shape = 's32[2]{0}', space=sflag, size = 0x8, scoped, tag = 'scoped memory for tpu_custom_call.1']
    #allocation6 [shape = 'u8[8192]{0}', space=vmem, size = 0x2000, scoped, tag = 'output window, operand 1']
    #allocation7 [shape = 's32[2]{0}', space=sflag, size = 0x8, scoped, tag = 'scoped memory for tpu_custom_call.1']
    %16 = vsyncpa [#allocation5], 0
    %s17 = scalar_lea.sflag [#allocation5], 1
    %18 = vsyncpa %s17, 0
    %19 = vsyncpa [#allocation7], 0
    %s20 = scalar_lea.sflag [#allocation7], 1
    %21 = vsyncpa %s20, 0
    loop: start=0, step=1, limit=4
    $region2: #{tpu_custom_call.1} parent=1 // loop_pre_header
      _
    $region3: #{tpu_custom_call.1} parent=1 // loop_header
      %s23 = sphi 0, %s27
      %p24 = scmp.ge.s32.totalorder %s23, 4
      %s30 = sphi 0, %s42
      %s31 = sphi 0, %s38
      %s32 = sphi 0, %s30
      %s33 = sphi 0, %s31
      %s34 = sphi 0, %s32
      %s35 = sphi 0, %s33
      %s47 = sphi 0, %s49
      %s50 = sphi 0, %s47
      %s51 = sphi 0, %s50
      %s67 = sphi 0, %s51
      %s73 = sphi 0, %s75
      %s76 = sphi 0, %s73
      %s77 = sphi 0, %s76
      %s93 = sphi 0, %s77
      %s97 = sphi 0, %s97
      %s99 = sphi 0, %s97
      %s100 = sphi 0, %s99
      %s114 = sphi 0, %s100
      %s118 = sphi 0, %s118
      %s120 = sphi 0, %s118
      %s121 = sphi 0, %s120
      %s135 = sphi 0, %s121
      %s139 = sphi 0, %s139
      %s141 = sphi 0, %s139
      %s142 = sphi 0, %s141
      %s156 = sphi 0, %s142
      %s160 = sphi 0, %s160
      %s162 = sphi 0, %s160
      %s163 = sphi 0, %s162
      %s177 = sphi 0, %s163
      %s181 = sphi 0, %s181
      %s183 = sphi 0, %s181
      %s184 = sphi 0, %s183
      %s198 = sphi 0, %s184
      %s202 = sphi 0, %s202
      %s204 = sphi 0, %s202
      %s205 = sphi 0, %s204
      %s219 = sphi 0, %s205
      %s223 = sphi 0, %s223
      %s225 = sphi 0, %s223
      %s226 = sphi 0, %s225
      %s240 = sphi 0, %s226
      %s248 = sphi 0, %s250
      %s251 = sphi 0, %s248
      %s252 = sphi 0, %s251
      %s268 = sphi 0, %s252
      %s276 = sphi 0, %s278
      %s279 = sphi 0, %s276
      %s280 = sphi 0, %s279
      %s296 = sphi 0, %s280
    $region4: #{tpu_custom_call.1} parent=1 // loop_header_branch
      %26 = sbr.rel (%p24) target = $region8
    $region5: #{tpu_custom_call.1} parent=1 // loop_body
      %s28 = ssub.s32 %s23, 1
      %s29 = ssub.s32 %s23, 2
      %s36 = sadd.s32 1, %s31
      %p37 = scmp.ge.s32.totalorder %s36, 1
      %s38 = scalar_select %p37, 0, %s36
      %s39 = sadd.s32 1, %s30
      %s40 = scalar_select %p37, %s39, %s30
      %p41 = scmp.ge.s32.totalorder %s40, 2
      %s42 = scalar_select %p41, 0, %s40
      %s43 = ssub.s32 %s30, %s42
      %s44 = ssub.s32 %s31, %s38
      %s45 = sor.u32 %s43, %s44
      %p46 = scmp.eq.s32.totalorder %s45, 0
      %s48 = sadd.s32 %s47, 1
      %s49 = scalar_select %p46, %s47, %s48
      %p52 = pneg %p46
      %p53 = scmp.eq.s32.totalorder %s23, 1
      %p54 = por %p52, %p53
      %p55 = scmp.ne.s32.totalorder %s47, %s50
      %p56 = scmp.eq.s32.totalorder %s23, 0
      %p57 = por %p55, %p56
      %p58 = scmp.ne.s32.totalorder %s47, %s50
      %p59 = scmp.eq.s32.totalorder %s28, 1
      %p60 = por %p58, %p59
      %p61 = scmp.ne.s32.totalorder %s50, %s51
      %p62 = scmp.eq.s32.totalorder %s28, 0
      %p63 = por %p61, %p62
      %p64 = scmp.ne.s32.totalorder %s50, %s51
      %p65 = scmp.eq.s32.totalorder %s29, 1
      %p66 = por %p64, %p65
      %p68 = scmp.ne.s32.totalorder %s51, %s67
      %p69 = scmp.eq.s32.totalorder %s29, 0
      %p70 = por %p68, %p69
      %s71 = ssub.s32 %s30, %s42
      %p72 = scmp.eq.s32.totalorder %s71, 0
      %s74 = sadd.s32 %s73, 1
      %s75 = scalar_select %p72, %s73, %s74
      %p78 = pneg %p72
      %p79 = scmp.eq.s32.totalorder %s23, 1
      %p80 = por %p78, %p79
      %p81 = scmp.ne.s32.totalorder %s73, %s76
      %p82 = scmp.eq.s32.totalorder %s23, 0
      %p83 = por %p81, %p82
      %p84 = scmp.ne.s32.totalorder %s73, %s76
      %p85 = scmp.eq.s32.totalorder %s28, 1
      %p86 = por %p84, %p85
      %p87 = scmp.ne.s32.totalorder %s76, %s77
      %p88 = scmp.eq.s32.totalorder %s28, 0
      %p89 = por %p87, %p88
      %p90 = scmp.ne.s32.totalorder %s76, %s77
      %p91 = scmp.eq.s32.totalorder %s29, 1
      %p92 = por %p90, %p91
      %p94 = scmp.ne.s32.totalorder %s77, %s93
      %p95 = scmp.eq.s32.totalorder %s29, 0
      %p96 = por %p94, %p95
      %s98 = sadd.s32 %s97, 1
      %p101 = scmp.eq.s32.totalorder %s23, 1
      %p102 = scmp.ne.s32.totalorder %s97, %s99
      %p103 = scmp.eq.s32.totalorder %s23, 0
      %p104 = por %p102, %p103
      %p105 = scmp.ne.s32.totalorder %s97, %s99
      %p106 = scmp.eq.s32.totalorder %s28, 1
      %p107 = por %p105, %p106
      %p108 = scmp.ne.s32.totalorder %s99, %s100
      %p109 = scmp.eq.s32.totalorder %s28, 0
      %p110 = por %p108, %p109
      %p111 = scmp.ne.s32.totalorder %s99, %s100
      %p112 = scmp.eq.s32.totalorder %s29, 1
      %p113 = por %p111, %p112
      %p115 = scmp.ne.s32.totalorder %s100, %s114
      %p116 = scmp.eq.s32.totalorder %s29, 0
      %p117 = por %p115, %p116
      %s119 = sadd.s32 %s118, 1
      %p122 = scmp.eq.s32.totalorder %s23, 1
      %p123 = scmp.ne.s32.totalorder %s118, %s120
      %p124 = scmp.eq.s32.totalorder %s23, 0
      %p125 = por %p123, %p124
      %p126 = scmp.ne.s32.totalorder %s118, %s120
      %p127 = scmp.eq.s32.totalorder %s28, 1
      %p128 = por %p126, %p127
      %p129 = scmp.ne.s32.totalorder %s120, %s121
      %p130 = scmp.eq.s32.totalorder %s28, 0
      %p131 = por %p129, %p130
      %p132 = scmp.ne.s32.totalorder %s120, %s121
      %p133 = scmp.eq.s32.totalorder %s29, 1
      %p134 = por %p132, %p133
      %p136 = scmp.ne.s32.totalorder %s121, %s135
      %p137 = scmp.eq.s32.totalorder %s29, 0
      %p138 = por %p136, %p137
      %s140 = sadd.s32 %s139, 1
      %p143 = scmp.eq.s32.totalorder %s23, 1
      %p144 = scmp.ne.s32.totalorder %s139, %s141
      %p145 = scmp.eq.s32.totalorder %s23, 0
      %p146 = por %p144, %p145
      %p147 = scmp.ne.s32.totalorder %s139, %s141
      %p148 = scmp.eq.s32.totalorder %s28, 1
      %p149 = por %p147, %p148
      %p150 = scmp.ne.s32.totalorder %s141, %s142
      %p151 = scmp.eq.s32.totalorder %s28, 0
      %p152 = por %p150, %p151
      %p153 = scmp.ne.s32.totalorder %s141, %s142
      %p154 = scmp.eq.s32.totalorder %s29, 1
      %p155 = por %p153, %p154
      %p157 = scmp.ne.s32.totalorder %s142, %s156
      %p158 = scmp.eq.s32.totalorder %s29, 0
      %p159 = por %p157, %p158
      %s161 = sadd.s32 %s160, 1
      %p164 = scmp.eq.s32.totalorder %s23, 1
      %p165 = scmp.ne.s32.totalorder %s160, %s162
      %p166 = scmp.eq.s32.totalorder %s23, 0
      %p167 = por %p165, %p166
      %p168 = scmp.ne.s32.totalorder %s160, %s162
      %p169 = scmp.eq.s32.totalorder %s28, 1
      %p170 = por %p168, %p169
      %p171 = scmp.ne.s32.totalorder %s162, %s163
      %p172 = scmp.eq.s32.totalorder %s28, 0
      %p173 = por %p171, %p172
      %p174 = scmp.ne.s32.totalorder %s162, %s163
      %p175 = scmp.eq.s32.totalorder %s29, 1
      %p176 = por %p174, %p175
      %p178 = scmp.ne.s32.totalorder %s163, %s177
      %p179 = scmp.eq.s32.totalorder %s29, 0
      %p180 = por %p178, %p179
      %s182 = sadd.s32 %s181, 1
      %p185 = scmp.eq.s32.totalorder %s23, 1
      %p186 = scmp.ne.s32.totalorder %s181, %s183
      %p187 = scmp.eq.s32.totalorder %s23, 0
      %p188 = por %p186, %p187
      %p189 = scmp.ne.s32.totalorder %s181, %s183
      %p190 = scmp.eq.s32.totalorder %s28, 1
      %p191 = por %p189, %p190
      %p192 = scmp.ne.s32.totalorder %s183, %s184
      %p193 = scmp.eq.s32.totalorder %s28, 0
      %p194 = por %p192, %p193
      %p195 = scmp.ne.s32.totalorder %s183, %s184
      %p196 = scmp.eq.s32.totalorder %s29, 1
      %p197 = por %p195, %p196
      %p199 = scmp.ne.s32.totalorder %s184, %s198
      %p200 = scmp.eq.s32.totalorder %s29, 0
      %p201 = por %p199, %p200
      %s203 = sadd.s32 %s202, 1
      %p206 = scmp.eq.s32.totalorder %s23, 1
      %p207 = scmp.ne.s32.totalorder %s202, %s204
      %p208 = scmp.eq.s32.totalorder %s23, 0
      %p209 = por %p207, %p208
      %p210 = scmp.ne.s32.totalorder %s202, %s204
      %p211 = scmp.eq.s32.totalorder %s28, 1
      %p212 = por %p210, %p211
      %p213 = scmp.ne.s32.totalorder %s204, %s205
      %p214 = scmp.eq.s32.totalorder %s28, 0
      %p215 = por %p213, %p214
      %p216 = scmp.ne.s32.totalorder %s204, %s205
      %p217 = scmp.eq.s32.totalorder %s29, 1
      %p218 = por %p216, %p217
      %p220 = scmp.ne.s32.totalorder %s205, %s219
      %p221 = scmp.eq.s32.totalorder %s29, 0
      %p222 = por %p220, %p221
      %s224 = sadd.s32 %s223, 1
      %p227 = scmp.eq.s32.totalorder %s23, 1
      %p228 = scmp.ne.s32.totalorder %s223, %s225
      %p229 = scmp.eq.s32.totalorder %s23, 0
      %p230 = por %p228, %p229
      %p231 = scmp.ne.s32.totalorder %s223, %s225
      %p232 = scmp.eq.s32.totalorder %s28, 1
      %p233 = por %p231, %p232
      %p234 = scmp.ne.s32.totalorder %s225, %s226
      %p235 = scmp.eq.s32.totalorder %s28, 0
      %p236 = por %p234, %p235
      %p237 = scmp.ne.s32.totalorder %s225, %s226
      %p238 = scmp.eq.s32.totalorder %s29, 1
      %p239 = por %p237, %p238
      %p241 = scmp.ne.s32.totalorder %s226, %s240
      %p242 = scmp.eq.s32.totalorder %s29, 0
      %p243 = por %p241, %p242
      %s244 = ssub.s32 %s30, %s42
      %s245 = ssub.s32 %s31, %s38
      %s246 = sor.u32 %s244, %s245
      %p247 = scmp.eq.s32.totalorder %s246, 0
      %s249 = sadd.s32 %s248, 1
      %s250 = scalar_select %p247, %s248, %s249
      %p253 = pneg %p247
      %p254 = scmp.eq.s32.totalorder %s23, 1
      %p255 = por %p253, %p254
      %p256 = scmp.ne.s32.totalorder %s248, %s251
      %p257 = scmp.eq.s32.totalorder %s23, 0
      %p258 = por %p256, %p257
      %p259 = scmp.ne.s32.totalorder %s248, %s251
      %p260 = scmp.eq.s32.totalorder %s28, 1
      %p261 = por %p259, %p260
      %p262 = scmp.ne.s32.totalorder %s251, %s252
      %p263 = scmp.eq.s32.totalorder %s28, 0
      %p264 = por %p262, %p263
      %p265 = scmp.ne.s32.totalorder %s251, %s252
      %p266 = scmp.eq.s32.totalorder %s29, 1
      %p267 = por %p265, %p266
      %p269 = scmp.ne.s32.totalorder %s252, %s268
      %p270 = scmp.eq.s32.totalorder %s29, 0
      %p271 = por %p269, %p270
      %s272 = ssub.s32 %s30, %s42
      %s273 = ssub.s32 %s31, %s38
      %s274 = sor.u32 %s272, %s273
      %p275 = scmp.eq.s32.totalorder %s274, 0
      %s277 = sadd.s32 %s276, 1
      %s278 = scalar_select %p275, %s276, %s277
      %p281 = pneg %p275
      %p282 = scmp.eq.s32.totalorder %s23, 1
      %p283 = por %p281, %p282
      %p284 = scmp.ne.s32.totalorder %s276, %s279
      %p285 = scmp.eq.s32.totalorder %s23, 0
      %p286 = por %p284, %p285
      %p287 = scmp.ne.s32.totalorder %s276, %s279
      %p288 = scmp.eq.s32.totalorder %s28, 1
      %p289 = por %p287, %p288
      %p290 = scmp.ne.s32.totalorder %s279, %s280
      %p291 = scmp.eq.s32.totalorder %s28, 0
      %p292 = por %p290, %p291
      %p293 = scmp.ne.s32.totalorder %s279, %s280
      %p294 = scmp.eq.s32.totalorder %s29, 1
      %p295 = por %p293, %p294
      %p297 = scmp.ne.s32.totalorder %s280, %s296
      %p298 = scmp.eq.s32.totalorder %s29, 0
      %p299 = por %p297, %p298
      %p300 = scmp.le.s32.totalorder 1, %s23
      %p301 = scmp.lt.s32.totalorder %s23, 3
      %p302 = pnand %p300, %p301
      %p303 = pneg %p302
      // Predicated region
      $region9: #{tpu_custom_call.1} parent=5 // pred_check
        _
      $region10: #{tpu_custom_call.1} parent=5 // pred_check_branch
        %305 = sbr.rel (%p302) target = $region12
      $region11: #{tpu_custom_call.1} parent=5 // pred_region
        %s306 = ssub.s32 %s23, 1
        // Predicated region
        $region13: #{tpu_custom_call.1} parent=11 // pred_check
          %p307 = pneg %p110
        $region14: #{tpu_custom_call.1} parent=11 // pred_check_branch
          %309 = sbr.rel (%p307) target = $region16
        $region15: #{tpu_custom_call.1} parent=11 // pred_region
          _
        $region16: #{tpu_custom_call.1} parent=11 // pred_fallthru
          _
        // Predicated region
        $region17: #{tpu_custom_call.1} parent=11 // pred_check
          %p310 = pneg %p131
        $region18: #{tpu_custom_call.1} parent=11 // pred_check_branch
          %312 = sbr.rel (%p310) target = $region20
        $region19: #{tpu_custom_call.1} parent=11 // pred_region
          _
        $region20: #{tpu_custom_call.1} parent=11 // pred_fallthru
          _
        // Predicated region
        $region21: #{tpu_custom_call.1} parent=11 // pred_check
          %p313 = pneg %p152
        $region22: #{tpu_custom_call.1} parent=11 // pred_check_branch
          %315 = sbr.rel (%p313) target = $region24
        $region23: #{tpu_custom_call.1} parent=11 // pred_region
          _
        $region24: #{tpu_custom_call.1} parent=11 // pred_fallthru
          _
        // Predicated region
        $region25: #{tpu_custom_call.1} parent=11 // pred_check
          %p316 = pneg %p173
        $region26: #{tpu_custom_call.1} parent=11 // pred_check_branch
          %318 = sbr.rel (%p316) target = $region28
        $region27: #{tpu_custom_call.1} parent=11 // pred_region
          _
        $region28: #{tpu_custom_call.1} parent=11 // pred_fallthru
          _
        // Predicated region
        $region29: #{tpu_custom_call.1} parent=11 // pred_check
          %p319 = pneg %p194
        $region30: #{tpu_custom_call.1} parent=11 // pred_check_branch
          %321 = sbr.rel (%p319) target = $region32
        $region31: #{tpu_custom_call.1} parent=11 // pred_region
          _
        $region32: #{tpu_custom_call.1} parent=11 // pred_fallthru
          _
        // Predicated region
        $region33: #{tpu_custom_call.1} parent=11 // pred_check
          %p322 = pneg %p215
        $region34: #{tpu_custom_call.1} parent=11 // pred_check_branch
          %324 = sbr.rel (%p322) target = $region36
        $region35: #{tpu_custom_call.1} parent=11 // pred_region
          _
        $region36: #{tpu_custom_call.1} parent=11 // pred_fallthru
          _
        // Predicated region
        $region37: #{tpu_custom_call.1} parent=11 // pred_check
          %p325 = pneg %p236
        $region38: #{tpu_custom_call.1} parent=11 // pred_check_branch
          %327 = sbr.rel (%p325) target = $region40
        $region39: #{tpu_custom_call.1} parent=11 // pred_region
          _
        $region40: #{tpu_custom_call.1} parent=11 // pred_fallthru
          _
      $region12: #{tpu_custom_call.1} parent=5 // pred_fallthru
        _
      %p328 = scmp.lt.s32.totalorder %s23, 2
      // Predicated region
      $region41: #{tpu_custom_call.1} parent=5 // pred_check
        %p329 = pneg %p328
      $region42: #{tpu_custom_call.1} parent=5 // pred_check_branch
        %331 = sbr.rel (%p329) target = $region44
      $region43: #{tpu_custom_call.1} parent=5 // pred_region
        // Predicated region
        $region45: #{tpu_custom_call.1} parent=43 // pred_check
          %p332 = pneg %p57
        $region46: #{tpu_custom_call.1} parent=43 // pred_check_branch
          %334 = sbr.rel (%p332) target = $region48
        $region47: #{tpu_custom_call.1} parent=43 // pred_region
          %p335 = scmp.lt.s32.totalorder %s30, 1
          %s336 = scalar_select %p335, %s30, 1
          %p337 = scmp.lt.s32.totalorder %s31, 0
          %s338 = scalar_select %p337, %s31, 0
          %s339 = sadd.s32 %s338, %s336
          %s340 = smul.addr %s339, 4
          %s341 = scalar_lea.vmem %s0, %s340
        $region48: #{tpu_custom_call.1} parent=43 // pred_fallthru
          _
        // Predicated region
        $region49: #{tpu_custom_call.1} parent=43 // pred_check
          %p342 = pneg %p83
        $region50: #{tpu_custom_call.1} parent=43 // pred_check_branch
          %344 = sbr.rel (%p342) target = $region52
        $region51: #{tpu_custom_call.1} parent=43 // pred_region
          %p345 = scmp.lt.s32.totalorder %s30, 1
          %s346 = scalar_select %p345, %s30, 1
          %s347 = smul.addr %s346, 16
          %s348 = smul.addr %s347, 4
          %s349 = scalar_lea.vmem %s1, %s348
        $region52: #{tpu_custom_call.1} parent=43 // pred_fallthru
          _
      $region44: #{tpu_custom_call.1} parent=5 // pred_fallthru
        _
      %p350 = scmp.le.s32.totalorder 1, %s23
      %p351 = scmp.lt.s32.totalorder %s23, 3
      %p352 = pnand %p350, %p351
      %p353 = pneg %p352
      // Predicated region
      $region53: #{tpu_custom_call.1} parent=5 // pred_check
        _
      $region54: #{tpu_custom_call.1} parent=5 // pred_check_branch
        %355 = sbr.rel (%p352) target = $region56
      $region55: #{tpu_custom_call.1} parent=5 // pred_region
        %s356 = ssub.s32 %s23, 1
        %p357 = scmp.lt.s32.totalorder %s32, 1
        %s358 = scalar_select %p357, %s32, 1
        %p359 = scmp.lt.s32.totalorder %s33, 0
        %s360 = scalar_select %p359, %s33, 0
        %s361 = sadd.s32 %s360, %s358
        %s362 = smul.addr %s361, 4
        %s363 = scalar_lea.vmem %s0, %s362
        %p364 = pneg %p63
        %p365 = pneg %p60
        %p366 = scmp.lt.s32.totalorder %s32, 1
        %s367 = scalar_select %p366, %s32, 1
        %s368 = smul.addr %s367, 16
        %s369 = smul.addr %s368, 4
        %s370 = scalar_lea.vmem %s1, %s369
        %p371 = pneg %p89
        %p372 = pneg %p86
        %p373 = pneg %p110
        %p374 = pneg %p107
        %p375 = pneg %p131
        %p376 = pneg %p128
        %p377 = pneg %p152
        %p378 = pneg %p149
        %p379 = pneg %p173
        %p380 = pneg %p170
        %p381 = pneg %p194
        %p382 = pneg %p191
        %p383 = pneg %p215
        %p384 = pneg %p212
        %p385 = pneg %p236
        %p386 = pneg %p233
        %p387 = pneg %p264
        %p388 = pneg %p261
        %s389 = sand.u32 %s251, 1
        %s390 = scalar_lea.sflag [#allocation5], %s389
        %s391 = sand.u32 %s251, 1
        %s392 = smul.addr %s391, 8
        %s393 = scalar_lea.vmem [#allocation4], %s392
        %p394 = pneg %p292
        %p395 = pneg %p289
        %s396 = sand.u32 %s279, 1
        %s397 = scalar_lea.sflag [#allocation7], %s396
        %s398 = sand.u32 %s279, 1
        %s399 = smul.addr %s398, 8
        %s400 = scalar_lea.vmem [#allocation6], %s399
        %p401 = scmp.lt.s32.totalorder %s32, 1
        %s402 = scalar_select %p401, %s32, 1
        %p403 = scmp.lt.s32.totalorder %s33, 0
        %s404 = scalar_select %p403, %s33, 0
        %s405 = sadd.s32 %s404, %s402
        %s406 = smul.addr %s405, 4
        %s407 = scalar_lea.vmem %s0, %s406
        %p408 = scmp.lt.s32.totalorder %s32, 1
        %s409 = scalar_select %p408, %s32, 1
        %s410 = smul.addr %s409, 16
        %s411 = smul.addr %s410, 4
        %s412 = scalar_lea.vmem %s1, %s411
        %p414 = scmp.eq.s32.totalorder %s33, 0
        // Predicated region
        $region57: #{tpu_custom_call.1} parent=55 // pred_check
          %p415 = pneg %p414
        $region58: #{tpu_custom_call.1} parent=55 // pred_check_branch
          %417 = sbr.rel (%p415) target = $region60
        $region59: #{tpu_custom_call.1} parent=55 // pred_region
          %v418 = vld [vmem:[%s412] sm:$0xf]
          %v419 = vld [vmem:[%s412 + $0x4] sm:$0xf]
          %v420 = vld [vmem:[%s412 + $0x8] sm:$0xf]
          %v421 = vld [vmem:[%s412 + $0xc] sm:$0xf]
          %v422 = vld [vmem:[%s412 + $0x10] sm:$0xf]
          %v423 = vld [vmem:[%s412 + $0x14] sm:$0xf]
          %v424 = vld [vmem:[%s412 + $0x18] sm:$0xf]
          %v425 = vld [vmem:[%s412 + $0x1c] sm:$0xf]
          %v426 = vld [vmem:[%s412 + $0x20] sm:$0xf]
          %v427 = vld [vmem:[%s412 + $0x24] sm:$0xf]
          %v428 = vld [vmem:[%s412 + $0x28] sm:$0xf]
          %v429 = vld [vmem:[%s412 + $0x2c] sm:$0xf]
          %v430 = vld [vmem:[%s412 + $0x30] sm:$0xf]
          %v431 = vld [vmem:[%s412 + $0x34] sm:$0xf]
          %v432 = vld [vmem:[%s412 + $0x38] sm:$0xf]
          %v433 = vld [vmem:[%s412 + $0x3c] sm:$0xf]
          %v434 = vld [vmem:[%s5] sm:$0xf]
          %v435 = vld [vmem:[%s5 + $0x4] sm:$0xf]
          %v436 = vld [vmem:[%s5 + $0x8] sm:$0xf]
          %v437 = vld [vmem:[%s5 + $0xc] sm:$0xf]
          %v438 = vld [vmem:[%s6] sm:$0x1]
          %v440 = vlaneseq
          %v441 = vshrl.u32 %v440, 7
          %v442 = vsub.s32 0, %v441
          %v443 = vrot.slane %v438, %v442
          %v461 = vunpack.c.l.b16 %v418
          %v462 = vunpack.c.l.b16 %v419
          %v463 = vunpack.c.l.b16 %v420
          %v464 = vunpack.c.l.b16 %v421
          %v465 = vunpack.c.l.b16 %v422
          %v466 = vunpack.c.l.b16 %v423
          %v467 = vunpack.c.l.b16 %v424
          %v468 = vunpack.c.l.b16 %v425
          %v469 = vunpack.c.l.b16 %v426
          %v470 = vunpack.c.l.b16 %v427
          %v471 = vunpack.c.l.b16 %v428
          %v472 = vunpack.c.l.b16 %v429
          %v473 = vunpack.c.l.b16 %v430
          %v474 = vunpack.c.l.b16 %v431
          %v475 = vunpack.c.l.b16 %v432
          %v476 = vunpack.c.l.b16 %v433
          %v477 = vpack.c.b16 %v462, %v461
          %v478 = vpack.c.b16 %v464, %v463
          %v479 = vpack.c.b16 %v466, %v465
          %v480 = vpack.c.b16 %v468, %v467
          %v481 = vpack.c.b16 %v470, %v469
          %v482 = vpack.c.b16 %v472, %v471
          %v483 = vpack.c.b16 %v474, %v473
          %v484 = vpack.c.b16 %v476, %v475
          %v489 = vunpack.c.l.b16 %v434
          %v490 = vunpack.c.l.b16 %v435
          %v491 = vunpack.c.l.b16 %v436
          %v492 = vunpack.c.l.b16 %v437
          %v493 = vpack.c.b16 %v490, %v489
          %v494 = vpack.c.b16 %v492, %v491
          %vm497 = vcmask 261120
          %v499 = vsel %vm497, %v477, 0
          %v502 = vsel %vm497, %v478, 0
          %v505 = vsel %vm497, %v479, 0
          %v508 = vsel %vm497, %v480, 0
          %v511 = vsel %vm497, %v481, 0
          %v514 = vsel %vm497, %v482, 0
          %v517 = vsel %vm497, %v483, 0
          %v520 = vsel %vm497, %v484, 0
          %522 = vmatprep.subr.bf16.mxu0 0
          %523 = vmatpush1.bf16.msra.mxu0 %v493
          %524 = vmatprep.subr.bf16.mxu0 0
          %525 = vmatpush1.bf16.msra.mxu0 %v494
          %526 = vmatprep.subr.bf16.mxu0 0
          %527 = vmatpush1.bf16.msra.mxu0 0
          %528 = vmatprep.subr.bf16.mxu0 0
          %529 = vmatpush1.bf16.msra.mxu0 0
          %530 = vmatprep.subr.bf16.mxu0 0
          %531 = vmatpush1.bf16.msra.mxu0 0
          %532 = vmatprep.subr.bf16.mxu0 0
          %533 = vmatpush1.bf16.msra.mxu0 0
          %534 = vmatprep.subr.bf16.mxu0 0
          %535 = vmatpush1.bf16.msra.mxu0 0
          %536 = vmatprep.subr.bf16.mxu0 0
          %537 = vmatpush1.bf16.msra.mxu0 0
          %538 = vmatprep.subr.bf16.mxu0 0
          %539 = vmatpush1.bf16.msra.mxu0 0
          %540 = vmatprep.subr.bf16.mxu0 0
          %541 = vmatpush1.bf16.msra.mxu0 0
          %542 = vmatprep.subr.bf16.mxu0 0
          %543 = vmatpush1.bf16.msra.mxu0 0
          %544 = vmatprep.subr.bf16.mxu0 0
          %545 = vmatpush1.bf16.msra.mxu0 0
          %546 = vmatprep.subr.bf16.mxu0 0
          %547 = vmatpush1.bf16.msra.mxu0 0
          %548 = vmatprep.subr.bf16.mxu0 0
          %549 = vmatpush1.bf16.msra.mxu0 0
          %550 = vmatprep.subr.bf16.mxu0 0
          %551 = vmatpush1.bf16.msra.mxu0 0
          %552 = vmatprep.subr.bf16.mxu0 0
          %553 = vmatpush1.bf16.msra.mxu0 0
          %554 = vmatprep.mubr.bf16.mxu0 0
          %555 = vmatmul.mubr.bf16.gmra.mrb[0].mxu0 %v499
          %v556 = vpop.f32.mrb[0].mxu0
          %v557 = vadd.f32 %v443, %v556
          %v558 = vpop.f32.mrb[0].mxu0
          %v559 = vpop.f32.mrb[0].mxu0
          %v560 = vadd.f32 %v443, %v559
          %v561 = vpop.f32.mrb[0].mxu0
          %562 = vmatprep.mubr.bf16.mxu0 0
          %563 = vmatmul.mubr.bf16.gmra.mrb[0].mxu0 %v502
          %v564 = vpop.f32.mrb[0].mxu0
          %v565 = vadd.f32 %v443, %v564
          %v566 = vpop.f32.mrb[0].mxu0
          %v567 = vpop.f32.mrb[0].mxu0
          %v568 = vadd.f32 %v443, %v567
          %v569 = vpop.f32.mrb[0].mxu0
          %570 = vmatprep.mubr.bf16.mxu0 0
          %571 = vmatmul.mubr.bf16.gmra.mrb[0].mxu0 %v505
          %v572 = vpop.f32.mrb[0].mxu0
          %v573 = vadd.f32 %v443, %v572
          %v574 = vpop.f32.mrb[0].mxu0
          %v575 = vpop.f32.mrb[0].mxu0
          %v576 = vadd.f32 %v443, %v575
          %v577 = vpop.f32.mrb[0].mxu0
          %578 = vmatprep.mubr.bf16.mxu0 0
          %579 = vmatmul.mubr.bf16.gmra.mrb[0].mxu0 %v508
          %v580 = vpop.f32.mrb[0].mxu0
          %v581 = vadd.f32 %v443, %v580
          %v582 = vpop.f32.mrb[0].mxu0
          %v583 = vpop.f32.mrb[0].mxu0
          %v584 = vadd.f32 %v443, %v583
          %v585 = vpop.f32.mrb[0].mxu0
          %586 = vmatprep.mubr.bf16.mxu0 0
          %587 = vmatmul.mubr.bf16.gmra.mrb[0].mxu0 %v511
          %v588 = vpop.f32.mrb[0].mxu0
          %v589 = vadd.f32 %v443, %v588
          %v590 = vpop.f32.mrb[0].mxu0
          %v591 = vpop.f32.mrb[0].mxu0
          %v592 = vadd.f32 %v443, %v591
          %v593 = vpop.f32.mrb[0].mxu0
          %594 = vmatprep.mubr.bf16.mxu0 0
          %595 = vmatmul.mubr.bf16.gmra.mrb[0].mxu0 %v514
          %v596 = vpop.f32.mrb[0].mxu0
          %v597 = vadd.f32 %v443, %v596
          %v598 = vpop.f32.mrb[0].mxu0
          %v599 = vpop.f32.mrb[0].mxu0
          %v600 = vadd.f32 %v443, %v599
          %v601 = vpop.f32.mrb[0].mxu0
          %602 = vmatprep.mubr.bf16.mxu0 0
          %603 = vmatmul.mubr.bf16.gmra.mrb[0].mxu0 %v517
          %v604 = vpop.f32.mrb[0].mxu0
          %v605 = vadd.f32 %v443, %v604
          %v606 = vpop.f32.mrb[0].mxu0
          %v607 = vpop.f32.mrb[0].mxu0
          %v608 = vadd.f32 %v443, %v607
          %v609 = vpop.f32.mrb[0].mxu0
          %610 = vmatprep.mubr.bf16.mxu0 0
          %611 = vmatmul.mubr.bf16.gmra.mrb[0].mxu0 %v520
          %v612 = vpop.f32.mrb[0].mxu0
          %v613 = vadd.f32 %v443, %v612
          %v614 = vpop.f32.mrb[0].mxu0
          %v615 = vpop.f32.mrb[0].mxu0
          %v616 = vadd.f32 %v443, %v615
          %v617 = vpop.f32.mrb[0].mxu0
          %618 = vdwg.mxu0
          %v619 = vld [vmem:[%s7] sm:$0xf]
          %v620 = vld [vmem:[%s7 + $0x4] sm:$0xf]
          %v621 = vld [vmem:[%s7 + $0x8] sm:$0xf]
          %v622 = vld [vmem:[%s7 + $0xc] sm:$0xf]
          %v623 = vld [vmem:[%s8] sm:$0x1]
          %v625 = vlaneseq
          %v626 = vshrl.u32 %v625, 7
          %v627 = vsub.s32 0, %v626
          %v628 = vrot.slane %v623, %v627
          %v634 = vunpack.c.l.b16 %v619
          %v635 = vunpack.c.l.b16 %v620
          %v636 = vunpack.c.l.b16 %v621
          %v637 = vunpack.c.l.b16 %v622
          %v638 = vpack.c.b16 %v635, %v634
          %v639 = vpack.c.b16 %v637, %v636
          %642 = vmatprep.subr.bf16.mxu0 0
          %643 = vmatpush1.bf16.msra.mxu0 %v638
          %644 = vmatprep.subr.bf16.mxu0 0
          %645 = vmatpush1.bf16.msra.mxu0 %v639
          %646 = vmatprep.subr.bf16.mxu0 0
          %647 = vmatpush1.bf16.msra.mxu0 0
          %648 = vmatprep.subr.bf16.mxu0 0
          %649 = vmatpush1.bf16.msra.mxu0 0
          %650 = vmatprep.subr.bf16.mxu0 0
          %651 = vmatpush1.bf16.msra.mxu0 0
          %652 = vmatprep.subr.bf16.mxu0 0
          %653 = vmatpush1.bf16.msra.mxu0 0
          %654 = vmatprep.subr.bf16.mxu0 0
          %655 = vmatpush1.bf16.msra.mxu0 0
          %656 = vmatprep.subr.bf16.mxu0 0
          %657 = vmatpush1.bf16.msra.mxu0 0
          %658 = vmatprep.subr.bf16.mxu0 0
          %659 = vmatpush1.bf16.msra.mxu0 0
          %660 = vmatprep.subr.bf16.mxu0 0
          %661 = vmatpush1.bf16.msra.mxu0 0
          %662 = vmatprep.subr.bf16.mxu0 0
          %663 = vmatpush1.bf16.msra.mxu0 0
          %664 = vmatprep.subr.bf16.mxu0 0
          %665 = vmatpush1.bf16.msra.mxu0 0
          %666 = vmatprep.subr.bf16.mxu0 0
          %667 = vmatpush1.bf16.msra.mxu0 0
          %668 = vmatprep.subr.bf16.mxu0 0
          %669 = vmatpush1.bf16.msra.mxu0 0
          %670 = vmatprep.subr.bf16.mxu0 0
          %671 = vmatpush1.bf16.msra.mxu0 0
          %672 = vmatprep.subr.bf16.mxu0 0
          %673 = vmatpush1.bf16.msra.mxu0 0
          %674 = vmatprep.mubr.bf16.mxu0 0
          %675 = vmatmul.mubr.bf16.gmra.mrb[0].mxu0 %v499
          %v676 = vpop.f32.mrb[0].mxu0
          %v677 = vadd.f32 %v628, %v676
          %v678 = vpop.f32.mrb[0].mxu0
          %v679 = vpop.f32.mrb[0].mxu0
          %v680 = vadd.f32 %v628, %v679
          %v681 = vpop.f32.mrb[0].mxu0
          %682 = vmatprep.mubr.bf16.mxu0 0
          %683 = vmatmul.mubr.bf16.gmra.mrb[0].mxu0 %v502
          %v684 = vpop.f32.mrb[0].mxu0
          %v685 = vadd.f32 %v628, %v684
          %v686 = vpop.f32.mrb[0].mxu0
          %v687 = vpop.f32.mrb[0].mxu0
          %v688 = vadd.f32 %v628, %v687
          %v689 = vpop.f32.mrb[0].mxu0
          %690 = vmatprep.mubr.bf16.mxu0 0
          %691 = vmatmul.mubr.bf16.gmra.mrb[0].mxu0 %v505
          %v692 = vpop.f32.mrb[0].mxu0
          %v693 = vadd.f32 %v628, %v692
          %v694 = vpop.f32.mrb[0].mxu0
          %v695 = vpop.f32.mrb[0].mxu0
          %v696 = vadd.f32 %v628, %v695
          %v697 = vpop.f32.mrb[0].mxu0
          %698 = vmatprep.mubr.bf16.mxu0 0
          %699 = vmatmul.mubr.bf16.gmra.mrb[0].mxu0 %v508
          %v700 = vpop.f32.mrb[0].mxu0
          %v701 = vadd.f32 %v628, %v700
          %v702 = vpop.f32.mrb[0].mxu0
          %v703 = vpop.f32.mrb[0].mxu0
          %v704 = vadd.f32 %v628, %v703
          %v705 = vpop.f32.mrb[0].mxu0
          %706 = vmatprep.mubr.bf16.mxu0 0
          %707 = vmatmul.mubr.bf16.gmra.mrb[0].mxu0 %v511
          %v708 = vpop.f32.mrb[0].mxu0
          %v709 = vadd.f32 %v628, %v708
          %v710 = vpop.f32.mrb[0].mxu0
          %v711 = vpop.f32.mrb[0].mxu0
          %v712 = vadd.f32 %v628, %v711
          %v713 = vpop.f32.mrb[0].mxu0
          %714 = vmatprep.mubr.bf16.mxu0 0
          %715 = vmatmul.mubr.bf16.gmra.mrb[0].mxu0 %v514
          %v716 = vpop.f32.mrb[0].mxu0
          %v717 = vadd.f32 %v628, %v716
          %v718 = vpop.f32.mrb[0].mxu0
          %v719 = vpop.f32.mrb[0].mxu0
          %v720 = vadd.f32 %v628, %v719
          %v721 = vpop.f32.mrb[0].mxu0
          %722 = vmatprep.mubr.bf16.mxu0 0
          %723 = vmatmul.mubr.bf16.gmra.mrb[0].mxu0 %v517
          %v724 = vpop.f32.mrb[0].mxu0
          %v725 = vadd.f32 %v628, %v724
          %v726 = vpop.f32.mrb[0].mxu0
          %v727 = vpop.f32.mrb[0].mxu0
          %v728 = vadd.f32 %v628, %v727
          %v729 = vpop.f32.mrb[0].mxu0
          %730 = vmatprep.mubr.bf16.mxu0 0
          %731 = vmatmul.mubr.bf16.gmra.mrb[0].mxu0 %v520
          %v732 = vpop.f32.mrb[0].mxu0
          %v733 = vadd.f32 %v628, %v732
          %v734 = vpop.f32.mrb[0].mxu0
          %v735 = vpop.f32.mrb[0].mxu0
          %v736 = vadd.f32 %v628, %v735
          %v737 = vpop.f32.mrb[0].mxu0
          %738 = vdwg.mxu0
          %v739 = vpack.c.bf16 %v560, %v557
          %v740 = vpack.c.bf16 %v568, %v565
          %v741 = vpack.c.bf16 %v576, %v573
          %v742 = vpack.c.bf16 %v584, %v581
          %v743 = vpack.c.bf16 %v592, %v589
          %v744 = vpack.c.bf16 %v600, %v597
          %v745 = vpack.c.bf16 %v608, %v605
          %v746 = vpack.c.bf16 %v616, %v613
          %747 = vst [vmem:[#allocation2] sm:$0xff] %v739
          %748 = vst [vmem:[#allocation2 + $0x8] sm:$0xff] %v740
          %749 = vst [vmem:[#allocation2 + $0x10] sm:$0xff] %v741
          %750 = vst [vmem:[#allocation2 + $0x18] sm:$0xff] %v742
          %751 = vst [vmem:[#allocation2 + $0x20] sm:$0xff] %v743
          %752 = vst [vmem:[#allocation2 + $0x28] sm:$0xff] %v744
          %753 = vst [vmem:[#allocation2 + $0x30] sm:$0xff] %v745
          %754 = vst [vmem:[#allocation2 + $0x38] sm:$0xff] %v746
          %v755 = vpack.c.bf16 %v680, %v677
          %v756 = vpack.c.bf16 %v688, %v685
          %v757 = vpack.c.bf16 %v696, %v693
          %v758 = vpack.c.bf16 %v704, %v701
          %v759 = vpack.c.bf16 %v712, %v709
          %v760 = vpack.c.bf16 %v720, %v717
          %v761 = vpack.c.bf16 %v728, %v725
          %v762 = vpack.c.bf16 %v736, %v733
          %763 = vst [vmem:[#allocation3] sm:$0xff] %v755
          %764 = vst [vmem:[#allocation3 + $0x8] sm:$0xff] %v756
          %765 = vst [vmem:[#allocation3 + $0x10] sm:$0xff] %v757
          %766 = vst [vmem:[#allocation3 + $0x18] sm:$0xff] %v758
          %767 = vst [vmem:[#allocation3 + $0x20] sm:$0xff] %v759
          %768 = vst [vmem:[#allocation3 + $0x28] sm:$0xff] %v760
          %769 = vst [vmem:[#allocation3 + $0x30] sm:$0xff] %v761
          %770 = vst [vmem:[#allocation3 + $0x38] sm:$0xff] %v762
        $region60: #{tpu_custom_call.1} parent=55 // pred_fallthru
          _
        %v771 = vld [vmem:[%s407] sm:$0xf]
        %v772 = vld [vmem:[%s3] sm:$0xf]
        %v773 = vld [vmem:[%s3 + $0x4] sm:$0xf]
        %v774 = vld [vmem:[%s3 + $0x8] sm:$0xf]
        %v775 = vld [vmem:[%s3 + $0xc] sm:$0xf]
        %v776 = vld [vmem:[%s4] sm:$0x1]
        %v778 = vlaneseq
        %v779 = vshrl.u32 %v778, 7
        %v780 = vsub.s32 0, %v779
        %v781 = vrot.slane %v776, %v780
        %v787 = vunpack.c.l.b16 %v772
        %v788 = vunpack.c.l.b16 %v773
        %v789 = vunpack.c.l.b16 %v774
        %v790 = vunpack.c.l.b16 %v775
        %v791 = vpack.c.b16 %v788, %v787
        %v792 = vpack.c.b16 %v790, %v789
        %vm795 = vcmask 261120
        %v797 = vsel %vm795, %v771, 0
        %799 = vmatprep.subr.bf16.mxu0 0
        %800 = vmatpush1.bf16.msra.mxu0 %v791
        %801 = vmatprep.subr.bf16.mxu0 0
        %802 = vmatpush1.bf16.msra.mxu0 %v792
        %803 = vmatprep.subr.bf16.mxu0 0
        %804 = vmatpush1.bf16.msra.mxu0 0
        %805 = vmatprep.subr.bf16.mxu0 0
        %806 = vmatpush1.bf16.msra.mxu0 0
        %807 = vmatprep.subr.bf16.mxu0 0
        %808 = vmatpush1.bf16.msra.mxu0 0
        %809 = vmatprep.subr.bf16.mxu0 0
        %810 = vmatpush1.bf16.msra.mxu0 0
        %811 = vmatprep.subr.bf16.mxu0 0
        %812 = vmatpush1.bf16.msra.mxu0 0
        %813 = vmatprep.subr.bf16.mxu0 0
        %814 = vmatpush1.bf16.msra.mxu0 0
        %815 = vmatprep.subr.bf16.mxu0 0
        %816 = vmatpush1.bf16.msra.mxu0 0
        %817 = vmatprep.subr.bf16.mxu0 0
        %818 = vmatpush1.bf16.msra.mxu0 0
        %819 = vmatprep.subr.bf16.mxu0 0
        %820 = vmatpush1.bf16.msra.mxu0 0
        %821 = vmatprep.subr.bf16.mxu0 0
        %822 = vmatpush1.bf16.msra.mxu0 0
        %823 = vmatprep.subr.bf16.mxu0 0
        %824 = vmatpush1.bf16.msra.mxu0 0
        %825 = vmatprep.subr.bf16.mxu0 0
        %826 = vmatpush1.bf16.msra.mxu0 0
        %827 = vmatprep.subr.bf16.mxu0 0
        %828 = vmatpush1.bf16.msra.mxu0 0
        %829 = vmatprep.subr.bf16.mxu0 0
        %830 = vmatpush1.bf16.msra.mxu0 0
        %831 = vmatprep.mubr.bf16.mxu0 0
        %832 = vmatmul.mubr.bf16.gmra.mrb[0].mxu0 %v797
        %v833 = vpop.f32.mrb[0].mxu0
        %v834 = vadd.f32 %v781, %v833
        %v835 = vpop.f32.mrb[0].mxu0
        %v836 = vpop.f32.mrb[0].mxu0
        %v837 = vpop.f32.mrb[0].mxu0
        %838 = vdwg.mxu0
        %v839 = vpack.c.bf16 %v834, %v834
        %v840 = vld [vmem:[#allocation2] sm:$0xff]
        %v841 = vld [vmem:[#allocation2 + $0x8] sm:$0xff]
        %v842 = vld [vmem:[#allocation2 + $0x10] sm:$0xff]
        %v843 = vld [vmem:[#allocation2 + $0x18] sm:$0xff]
        %v844 = vld [vmem:[#allocation2 + $0x20] sm:$0xff]
        %v845 = vld [vmem:[#allocation2 + $0x28] sm:$0xff]
        %v846 = vld [vmem:[#allocation2 + $0x30] sm:$0xff]
        %v847 = vld [vmem:[#allocation2 + $0x38] sm:$0xff]
        %v848 = vld [vmem:[%s2] sm:$0x1]
        %v850 = vlaneseq
        %v851 = vshrl.u32 %v850, 7
        %v852 = vsub.s32 0, %v851
        %v853 = vrot.slane %v848, %v852
        %855 = vmatprep.subr.bf16.mxu0 0
        %856 = vmatpush1.bf16.xpose.msra.mxu0 %v840
        %857 = vmatprep.subr.bf16.mxu0 0
        %858 = vmatpush1.bf16.xpose.msra.mxu0 %v841
        %859 = vmatprep.subr.bf16.mxu0 0
        %860 = vmatpush1.bf16.xpose.msra.mxu0 %v842
        %861 = vmatprep.subr.bf16.mxu0 0
        %862 = vmatpush1.bf16.xpose.msra.mxu0 %v843
        %863 = vmatprep.subr.bf16.mxu0 0
        %864 = vmatpush1.bf16.xpose.msra.mxu0 %v844
        %865 = vmatprep.subr.bf16.mxu0 0
        %866 = vmatpush1.bf16.xpose.msra.mxu0 %v845
        %867 = vmatprep.subr.bf16.mxu0 0
        %868 = vmatpush1.bf16.xpose.msra.mxu0 %v846
        %869 = vmatprep.subr.bf16.mxu0 0
        %870 = vmatpush1.bf16.xpose.msra.mxu0 %v847
        %871 = vmatprep.subr.bf16.mxu0 0
        %872 = vmatpush1.bf16.xpose.msra.mxu0 0
        %873 = vmatprep.subr.bf16.mxu0 0
        %874 = vmatpush1.bf16.xpose.msra.mxu0 0
        %875 = vmatprep.subr.bf16.mxu0 0
        %876 = vmatpush1.bf16.xpose.msra.mxu0 0
        %877 = vmatprep.subr.bf16.mxu0 0
        %878 = vmatpush1.bf16.xpose.msra.mxu0 0
        %879 = vmatprep.subr.bf16.mxu0 0
        %880 = vmatpush1.bf16.xpose.msra.mxu0 0
        %881 = vmatprep.subr.bf16.mxu0 0
        %882 = vmatpush1.bf16.xpose.msra.mxu0 0
        %883 = vmatprep.subr.bf16.mxu0 0
        %884 = vmatpush1.bf16.xpose.msra.mxu0 0
        %885 = vmatprep.subr.bf16.mxu0 0
        %886 = vmatpush1.bf16.xpose.msra.mxu0 0
        %887 = vmatprep.mubr.bf16.mxu0 0
        %888 = vmatmul.mubr.bf16.gmra.mrb[0].mxu0 %v839
        %v889 = vpop.f32.mrb[0].mxu0
        %v890 = vadd.f32 %v853, %v889
        %v891 = vpop.f32.mrb[0].mxu0
        %v892 = vpop.f32.mrb[0].mxu0
        %v893 = vpop.f32.mrb[0].mxu0
        %894 = vdwg.mxu0
        %895 = vmax.xlane.f32.xlu0 %v890
        %v896 = vpop.xlane.xlu0 %895
        %v897 = vsub.f32 %v890, %v896
        %v898 = vpack.c.bf16 %v897, %v897
        %v900 = vmul.bf16 %v898, 1069105081
        %v901 = vpow.bf16.pop %v900
        %v902 = vunpack.c.l.bf16 %v901
        %903 = vadd.xlane.f32.xlu0 %v902
        %v904 = vpop.xlane.xlu0 %903
        %v905 = vrcp.pop %v904
        %v906 = vmul.f32 %v902, %v905
        %907 = vst [vmem:[%s400] sm:$0xff] %v906
        %v908 = vpack.c.bf16 %v906, %v906
        %v909 = vld [vmem:[#allocation3] sm:$0xff]
        %v910 = vld [vmem:[#allocation3 + $0x8] sm:$0xff]
        %v911 = vld [vmem:[#allocation3 + $0x10] sm:$0xff]
        %v912 = vld [vmem:[#allocation3 + $0x18] sm:$0xff]
        %v913 = vld [vmem:[#allocation3 + $0x20] sm:$0xff]
        %v914 = vld [vmem:[#allocation3 + $0x28] sm:$0xff]
        %v915 = vld [vmem:[#allocation3 + $0x30] sm:$0xff]
        %v916 = vld [vmem:[#allocation3 + $0x38] sm:$0xff]
        %917 = vmatprep.subr.bf16.mxu0 0
        %918 = vmatpush1.bf16.msra.mxu0 %v909
        %919 = vmatprep.subr.bf16.mxu0 0
        %920 = vmatpush1.bf16.msra.mxu0 %v910
        %921 = vmatprep.subr.bf16.mxu0 0
        %922 = vmatpush1.bf16.msra.mxu0 %v911
        %923 = vmatprep.subr.bf16.mxu0 0
        %924 = vmatpush1.bf16.msra.mxu0 %v912
        %925 = vmatprep.subr.bf16.mxu0 0
        %926 = vmatpush1.bf16.msra.mxu0 %v913
        %927 = vmatprep.subr.bf16.mxu0 0
        %928 = vmatpush1.bf16.msra.mxu0 %v914
        %929 = vmatprep.subr.bf16.mxu0 0
        %930 = vmatpush1.bf16.msra.mxu0 %v915
        %931 = vmatprep.subr.bf16.mxu0 0
        %932 = vmatpush1.bf16.msra.mxu0 %v916
        %933 = vmatprep.subr.bf16.mxu0 0
        %934 = vmatpush1.bf16.msra.mxu0 0
        %935 = vmatprep.subr.bf16.mxu0 0
        %936 = vmatpush1.bf16.msra.mxu0 0
        %937 = vmatprep.subr.bf16.mxu0 0
        %938 = vmatpush1.bf16.msra.mxu0 0
        %939 = vmatprep.subr.bf16.mxu0 0
        %940 = vmatpush1.bf16.msra.mxu0 0
        %941 = vmatprep.subr.bf16.mxu0 0
        %942 = vmatpush1.bf16.msra.mxu0 0
        %943 = vmatprep.subr.bf16.mxu0 0
        %944 = vmatpush1.bf16.msra.mxu0 0
        %945 = vmatprep.subr.bf16.mxu0 0
        %946 = vmatpush1.bf16.msra.mxu0 0
        %947 = vmatprep.subr.bf16.mxu0 0
        %948 = vmatpush1.bf16.msra.mxu0 0
        %949 = vmatprep.mubr.bf16.mxu0 0
        %950 = vmatmul.mubr.bf16.gmra.mrb[0].mxu0 %v908
        %v951 = vpop.f32.mrb[0].mxu0
        %v952 = vadd.f32 0.0, %v951
        %v953 = vpop.f32.mrb[0].mxu0
        %v954 = vpop.f32.mrb[0].mxu0
        %v955 = vpop.f32.mrb[0].mxu0
        %956 = vdwg.mxu0
        %957 = vst [vmem:[%s393] sm:$0xff] %v952
        %s958 = sand.u32 %s251, 1
        %s959 = scalar_lea.sflag [#allocation5], %s958
        %s960 = sand.u32 %s251, 1
        %s961 = smul.addr %s960, 8
        %s962 = scalar_lea.vmem [#allocation4], %s961
        %s963 = sand.u32 %s279, 1
        %s964 = scalar_lea.sflag [#allocation7], %s963
        %s965 = sand.u32 %s279, 1
        %s966 = smul.addr %s965, 8
        %s967 = scalar_lea.vmem [#allocation6], %s966
        // Predicated region
        $region61: #{tpu_custom_call.1} parent=55 // pred_check
          %p968 = pneg %p261
        $region62: #{tpu_custom_call.1} parent=55 // pred_check_branch
          %970 = sbr.rel (%p968) target = $region64
        $region63: #{tpu_custom_call.1} parent=55 // pred_region
          %s972 = ssub.s32 128, 128
          %973 = vsyncadd %s959, %s972
          %s974 = sadd.s32 %s33, %s32
          %s975 = smul.addr %s974, 128
          %s976 = scalar_lea.hbm %s9, %s975
          %s978 = sshll.u32 %s962, 4
          %s979 = int_to_ptr.vmem [resolvable:$true] %s978
          %981 = dma.vmem_to_hbm [thread:$0]  %s979, 128, %s976, %s959
        $region64: #{tpu_custom_call.1} parent=55 // pred_fallthru
          _
        // Predicated region
        $region65: #{tpu_custom_call.1} parent=55 // pred_check
          %p982 = pneg %p289
        $region66: #{tpu_custom_call.1} parent=55 // pred_check_branch
          %984 = sbr.rel (%p982) target = $region68
        $region67: #{tpu_custom_call.1} parent=55 // pred_region
          %s986 = ssub.s32 128, 128
          %987 = vsyncadd %s964, %s986
          %s988 = sadd.s32 %s33, %s32
          %s989 = smul.addr %s988, 128
          %s990 = scalar_lea.hbm %s10, %s989
          %s992 = sshll.u32 %s967, 4
          %s993 = int_to_ptr.vmem [resolvable:$true] %s992
          %995 = dma.vmem_to_hbm [thread:$0]  %s993, 128, %s990, %s964
        $region68: #{tpu_custom_call.1} parent=55 // pred_fallthru
          _
      $region56: #{tpu_custom_call.1} parent=5 // pred_fallthru
        _
      %p996 = scmp.le.s32.totalorder 2, %s23
      // Predicated region
      $region69: #{tpu_custom_call.1} parent=5 // pred_check
        %p997 = pneg %p996
      $region70: #{tpu_custom_call.1} parent=5 // pred_check_branch
        %999 = sbr.rel (%p997) target = $region72
      $region71: #{tpu_custom_call.1} parent=5 // pred_region
        %s1000 = ssub.s32 %s23, 2
        // Predicated region
        $region73: #{tpu_custom_call.1} parent=71 // pred_check
          %p1001 = pneg %p267
        $region74: #{tpu_custom_call.1} parent=71 // pred_check_branch
          %1003 = sbr.rel (%p1001) target = $region76
        $region75: #{tpu_custom_call.1} parent=71 // pred_region
          %s1004 = sand.u32 %s252, 1
          %s1005 = scalar_lea.sflag [#allocation5], %s1004
          %s1006 = sand.u32 %s252, 1
          %s1007 = smul.addr %s1006, 8
          %s1008 = scalar_lea.vmem [#allocation4], %s1007
          %1009 = dma.done %s1005, 128
        $region76: #{tpu_custom_call.1} parent=71 // pred_fallthru
          _
        // Predicated region
        $region77: #{tpu_custom_call.1} parent=71 // pred_check
          %p1010 = pneg %p295
        $region78: #{tpu_custom_call.1} parent=71 // pred_check_branch
          %1012 = sbr.rel (%p1010) target = $region80
        $region79: #{tpu_custom_call.1} parent=71 // pred_region
          %s1013 = sand.u32 %s280, 1
          %s1014 = scalar_lea.sflag [#allocation7], %s1013
          %s1015 = sand.u32 %s280, 1
          %s1016 = smul.addr %s1015, 8
          %s1017 = scalar_lea.vmem [#allocation6], %s1016
          %1018 = dma.done %s1014, 128
        $region80: #{tpu_custom_call.1} parent=71 // pred_fallthru
          _
      $region72: #{tpu_custom_call.1} parent=5 // pred_fallthru
        _
    $region6: #{tpu_custom_call.1} parent=1 // loop_footer
      %s27 = sadd.s32 1, %s23
    $region7: #{tpu_custom_call.1} parent=1 // loop_footer_branch
      %22 = sbr.rel target = $region3
    $region8: #{tpu_custom_call.1} parent=1 // loop_exit
      _
    %1019 = vsyncpa [#allocation5], 1
    %s1020 = scalar_lea.sflag [#allocation5], 1
    %1021 = vsyncpa %s1020, 1
    %1022 = vsyncpa [#allocation7], 1
    %s1023 = scalar_lea.sflag [#allocation7], 1
    %1024 = vsyncpa %s1023, 1

</llo_original>
